<compile_context>
chip_gen: v7x
topology: tpu7x:2x2x1
jax: 0.10.0
libtpu: 0.0.40
codegen_flags: <defaults>
</compile_context>

<pallas_src>
import jax
import jax.numpy as jnp
from jax import lax
from jax.experimental import pallas as pl
from jax.experimental.pallas import tpu as pltpu

# One one-hot slab = (_R_CHUNK, _LANE_CHUNK) f32 = 32 vregs -> lives in vregs,
# never spills.  _LANE_CHUNK is a multiple of 128 so all stores are lane-dense.
_R_CHUNK = 128
_LANE_CHUNK = 256


def build_relative_position_index(window_size):
    """Pure-JAX re-implementation of the __init__ buffer construction (glue)."""
    Wh, Ww = window_size
    coords_h = jnp.arange(Wh)
    coords_w = jnp.arange(Ww)
    coords = jnp.stack(jnp.meshgrid(coords_h, coords_w, indexing="ij"))  # (2, Wh, Ww)
    coords_flatten = coords.reshape(2, -1)                               # (2, Wh*Ww)
    relative_coords = coords_flatten[:, :, None] - coords_flatten[:, None, :]
    relative_coords = jnp.transpose(relative_coords, (1, 2, 0))          # (N, N, 2)
    rc0 = (relative_coords[..., 0] + (Wh - 1)) * (2 * Ww - 1)
    rc1 = relative_coords[..., 1] + (Ww - 1)
    rel = (rc0 + rc1).astype(jnp.int32)                                  # (N, N)

    num_relative_distance = (2 * Wh - 1) * (2 * Ww - 1) + 3
    S = Wh * Ww + 1
    idx = jnp.zeros((S, S), dtype=jnp.int32)
    idx = idx.at[1:, 1:].set(rel)
    idx = idx.at[0, :].set(num_relative_distance - 3)
    idx = idx.at[:, 0].set(num_relative_distance - 2)
    idx = idx.at[0, 0].set(num_relative_distance - 1)
    return idx


def _rpb_gather_kernel(idx_ref, table_t_ref, out_ref):
    """Gather rows of table_t by idx via chunked one-hot MXU matmuls.

    idx_ref:     (1, TS)   int32        -- padded slots hold -1 (match nothing)
    table_t_ref: (Hp, Rp)  compute dtype -- transposed + zero-padded bias table
    out_ref:     (Hp, TS)  out dtype
    """
    Hp, Rp = table_t_ref.shape
    TS = idx_ref.shape[1]
    n_rc = Rp // _R_CHUNK
    n_nc = TS // _LANE_CHUNK
    cdt = table_t_ref.dtype

    # Hoisted once: loop bodies only shift the (1, NC)-wide index against it.
    iota_r = lax.broadcasted_iota(jnp.int32, (_R_CHUNK, _LANE_CHUNK), 0)

    # Static Python loops: trip counts are small compile-time constants, all
    # slices static & 128-aligned (equivalent to lax.fori_loop(unroll=True)).
    for n in range(n_nc):
        n0 = n * _LANE_CHUNK
        idx_chunk = idx_ref[:, n0:n0 + _LANE_CHUNK]            # (1, NC) int32
        acc = jnp.zeros((Hp, _LANE_CHUNK), jnp.float32)
        for r in range(n_rc):
            r0 = r * _R_CHUNK
            # onehot[j, i] = (idx[i] == r0 + j); built as one (RC, NC) slab that
            # stays in vregs (no VMEM spill / reload round trip).
            onehot = ((idx_chunk - r0) == iota_r).astype(cdt)   # (RC, NC)
            acc = acc + jnp.dot(table_t_ref[:, r0:r0 + _R_CHUNK], onehot,
                                preferred_element_type=jnp.float32)
        out_ref[:, n0:n0 + _LANE_CHUNK] = acc.astype(out_ref.dtype)


def relative_position_bias(table, rel_idx, *, tile_ss=4096,
                           compute_dtype=jnp.float32, out_dtype=None):
    """Equivalent of RelativePositionBias.forward(masks=None).

    table:   (R, H) bias table, R = (2*Wh-1)*(2*Ww-1)+3
    rel_idx: (S, S) int relative-position index, S = Wh*Ww + 1
    Returns (1, H, S, S) in `out_dtype` (default float32, bit-exact gather).
    Set compute_dtype/out_dtype to bf16 only if the consumer is bf16.
    """
    S = rel_idx.shape[0]
    R, H = table.shape
    SS = S * S
    out_dtype = jnp.float32 if out_dtype is None else out_dtype

    # Pad heads to a sublane multiple (unmasked stores, full MXU result rows)
    # and R to a multiple of the one-hot row chunk.
    Hp = pl.cdiv(H, 8) * 8
    Rp = pl.cdiv(R, _R_CHUNK) * _R_CHUNK

    # Lane-tile size: multiple of _LANE_CHUNK (hence of 128), capped by the
    # rounded problem size.  Per grid step VMEM ~= 2*(Hp*ts + ts + Hp*Rp)*4 B,
    # which for Hp<=32, ts<=8192 is well under even v5e's 16 MiB scoped default
    # (the one-hot itself never touches VMEM), so no vmem_limit override needed.
    ss_rounded = pl.cdiv(SS, _LANE_CHUNK) * _LANE_CHUNK
    ts = max(_LANE_CHUNK, (tile_ss // _LANE_CHUNK) * _LANE_CHUNK)
    ts = min(ts, ss_rounded)
    # Keep >=2 grid steps on larger problems so the "parallel" SS axis can
    # shard across v7x's two TensorCores.
    if ss_rounded // ts <= 1 and ts >= 2 * _LANE_CHUNK and SS > 2048:
        ts = pl.cdiv(ts // 2, _LANE_CHUNK) * _LANE_CHUNK
    SS_pad = pl.cdiv(SS, ts) * ts
    n_tiles = SS_pad // ts

    # Lane-major index vector, padded with -1 (never matches iota >= 0).
    idx_flat = rel_idx.reshape(-1).astype(jnp.int32)
    idx_pad = jnp.full((1, SS_pad), -1, dtype=jnp.int32).at[0, :SS].set(idx_flat)

    # (R, H) -> (Hp, Rp): tiny transpose + zero-pad outside the kernel.
    table_t = jnp.zeros((Hp, Rp), compute_dtype).at[:H, :R].set(
        table.T.astype(compute_dtype))

    gathered = pl.pallas_call(
        _rpb_gather_kernel,
        out_shape=jax.ShapeDtypeStruct((Hp, SS_pad), out_dtype),
        grid=(n_tiles,),
        in_specs=[
            pl.BlockSpec((1, ts), lambda i: (0, i)),     # index tile (lane-dense)
            pl.BlockSpec((Hp, Rp), lambda i: (0, 0)),    # table replicated
        ],
        out_specs=pl.BlockSpec((Hp, ts), lambda i: (0, i)),
        compiler_params=pltpu.CompilerParams(
            dimension_semantics=("parallel",),
        ),
    )(idx_pad, table_t)

    # (Hp, SS_pad) -> (H, SS) -> (1, H, S, S): slice + metadata reshape only
    # (heads-major layout already emitted by the kernel; no XLA transpose).
    return gathered[:H, :SS].reshape(1, H, S, S)


# TODO(synk): the `masks is not None` branch (per-sample dynamic relative
# indices) is not implemented; it would reuse the same chunked one-hot matmul
# kernel with an extra batch grid axis over N.


if __name__ == "__main__":
    def ref_bias(table, rel_idx, num_heads):
        s = rel_idx.shape[0]
        ref = table[rel_idx.reshape(-1)].reshape(s, s, num_heads)
        return jnp.transpose(ref, (2, 0, 1))[None]

    key = jax.random.PRNGKey(0)
    k1, k2 = jax.random.split(key)

    # Case 1: module-consistent small config (window 4x4, 8 heads).
    Wh, Ww = 4, 4
    num_heads = 8
    R = (2 * Wh - 1) * (2 * Ww - 1) + 3          # 52
    S = Wh * Ww + 1                               # 17
    table = jax.random.normal(k1, (R, num_heads), dtype=jnp.float32)
    rel_idx = build_relative_position_index((Wh, Ww))
    out = jax.block_until_ready(relative_position_bias(table, rel_idx))
    assert out.shape == (1, num_heads, S, S), out.shape
    assert jnp.allclose(out, ref_bias(table, rel_idx, num_heads), atol=1e-6)

    # Case 2: exercises R-chunking, head padding (12 -> 16) and a 2-tile grid.
    Wh, Ww = 7, 7
    num_heads = 12
    R = (2 * Wh - 1) * (2 * Ww - 1) + 3          # 172
    S = Wh * Ww + 1                               # 50
    table = jax.random.normal(k2, (R, num_heads), dtype=jnp.float32)
    rel_idx = build_relative_position_index((Wh, Ww))
    out = jax.block_until_ready(relative_position_bias(table, rel_idx))
    assert out.shape == (1, num_heads, S, S), out.shape
    assert jnp.allclose(out, ref_bias(table, rel_idx, num_heads), atol=1e-6)

    print("KERNEL_OK")
</pallas_src>

<mosaic_0001>
module attributes {stable_mosaic.version = 11 : i64} {
  func.func @_rpb_gather_kernel(%arg0: i32, %arg1: memref<1x512xi32, #tpu.memory_space<vmem>>, %arg2: memref<8x128xf32, #tpu.memory_space<vmem>>, %arg3: memref<8x512xf32, #tpu.memory_space<vmem>>) attributes {dimension_semantics = [#tpu.dimension_semantics<parallel>], iteration_bounds = array<i64: 1>, scalar_prefetch = 0 : i64, scratch_operands = 0 : i64, tpu.core_type = #tpu.core_type<tc>, window_params = [{transform_indices = @transform_0, window_bounds = array<i64: 1, 512>}, {pipeline_mode = #tpu.pipeline_mode<synchronous>, transform_indices = @transform_1, window_bounds = array<i64: 8, 128>}, {transform_indices = @transform_2, window_bounds = array<i64: 8, 512>}]} {
    %0 = tpu.iota {dimensions = array<i32: 0>} : vector<128x256xi32>
    %c0 = arith.constant 0 : index
    %c0_0 = arith.constant 0 : index
    %1 = vector.load %arg1[%c0, %c0_0] : memref<1x512xi32, #tpu.memory_space<vmem>>, vector<1x256xi32>
    %cst = arith.constant 0.000000e+00 : f32
    %2 = vector.broadcast %cst : f32 to vector<8x256xf32>
    %c0_i32 = arith.constant 0 : i32
    %3 = vector.broadcast %c0_i32 : i32 to vector<1x256xi32>
    %4 = arith.subi %1, %3 : vector<1x256xi32>
    %5 = vector.broadcast %4 : vector<1x256xi32> to vector<128x256xi32>
    %6 = arith.cmpi eq, %5, %0 : vector<128x256xi32>
    %7 = arith.extui %6 : vector<128x256xi1> to vector<128x256xi32>
    %8 = arith.sitofp %7 : vector<128x256xi32> to vector<128x256xf32>
    %c0_1 = arith.constant 0 : index
    %c0_2 = arith.constant 0 : index
    %9 = vector.load %arg2[%c0_1, %c0_2] : memref<8x128xf32, #tpu.memory_space<vmem>>, vector<8x128xf32>
    %cst_3 = arith.constant dense<0.000000e+00> : vector<8x256xf32>
    %10 = tpu.matmul %9, %8, %cst_3 {dimension_numbers = #tpu.dot_dimension_numbers<[1], [0], [0], [1], [0, 0, 1, 1], [], []>} : vector<8x128xf32>, vector<128x256xf32>, vector<8x256xf32> -> vector<8x256xf32>
    %11 = arith.addf %2, %10 : vector<8x256xf32>
    %c0_4 = arith.constant 0 : index
    %c0_5 = arith.constant 0 : index
    %12 = vector.load %arg3[%c0_4, %c0_5] : memref<8x512xf32, #tpu.memory_space<vmem>>, vector<8x256xf32>
    tpu.vector_store %arg3[%c0_4, %c0_5], %11 {strides = array<i32>} : memref<8x512xf32, #tpu.memory_space<vmem>>, vector<8x256xf32>,
    %c0_6 = arith.constant 0 : index
    %c256 = arith.constant 256 : index
    %13 = vector.load %arg1[%c0_6, %c256] : memref<1x512xi32, #tpu.memory_space<vmem>>, vector<1x256xi32>
    %cst_7 = arith.constant 0.000000e+00 : f32
    %14 = vector.broadcast %cst_7 : f32 to vector<8x256xf32>
    %c0_i32_8 = arith.constant 0 : i32
    %15 = vector.broadcast %c0_i32_8 : i32 to vector<1x256xi32>
    %16 = arith.subi %13, %15 : vector<1x256xi32>
    %17 = vector.broadcast %16 : vector<1x256xi32> to vector<128x256xi32>
    %18 = arith.cmpi eq, %17, %0 : vector<128x256xi32>
    %19 = arith.extui %18 : vector<128x256xi1> to vector<128x256xi32>
    %20 = arith.sitofp %19 : vector<128x256xi32> to vector<128x256xf32>
    %c0_9 = arith.constant 0 : index
    %c0_10 = arith.constant 0 : index
    %21 = vector.load %arg2[%c0_9, %c0_10] : memref<8x128xf32, #tpu.memory_space<vmem>>, vector<8x128xf32>
    %cst_11 = arith.constant dense<0.000000e+00> : vector<8x256xf32>
    %22 = tpu.matmul %21, %20, %cst_11 {dimension_numbers = #tpu.dot_dimension_numbers<[1], [0], [0], [1], [0, 0, 1, 1], [], []>} : vector<8x128xf32>, vector<128x256xf32>, vector<8x256xf32> -> vector<8x256xf32>
    %23 = arith.addf %14, %22 : vector<8x256xf32>
    %c0_12 = arith.constant 0 : index
    %c256_13 = arith.constant 256 : index
    %24 = vector.load %arg3[%c0_12, %c256_13] : memref<8x512xf32, #tpu.memory_space<vmem>>, vector<8x256xf32>
    tpu.vector_store %arg3[%c0_12, %c256_13], %23 {strides = array<i32>} : memref<8x512xf32, #tpu.memory_space<vmem>>, vector<8x256xf32>,
    return
  }
  func.func @transform_0(%arg0: i32) -> (i32, i32) {
    %c0_i32 = arith.constant 0 : i32
    %c0_i32_0 = arith.constant 0 : i32
    return %c0_i32, %arg0 : i32, i32
  }
  func.func @transform_1(%arg0: i32) -> (i32, i32) {
    %c0_i32 = arith.constant 0 : i32
    %c0_i32_0 = arith.constant 0 : i32
    %c0_i32_1 = arith.constant 0 : i32
    return %c0_i32, %c0_i32_0 : i32, i32
  }
  func.func @transform_2(%arg0: i32) -> (i32, i32) {
    %c0_i32 = arith.constant 0 : i32
    %c0_i32_0 = arith.constant 0 : i32
    return %c0_i32, %arg0 : i32, i32
  }
}

</mosaic_0001>

<llo_original>
// kernel: tpu_custom_call.1
$region0: #{tpu_custom_call.1}
  #allocation0 [shape = 'u32[]', space=smem, size = 0x4, offset = 0x4, fixed_abs, tag = 'smem constant byte address 0x4 - core index']
  #allocation1 [shape = 'u32[144,128]{1,0:T(1,128)}', space=vmem, size = 0x12000, scoped, tag = 'internal scratch']
  %s0 = inlined_call_operand.hbm [shape: s32[1,512], index: 0, kind: input, shape index: {}]
  %s1 = inlined_call_operand.hbm [shape: f32[8,128], index: 1, kind: input, shape index: {}]
  %s2 = inlined_call_operand.hbm [shape: f32[8,512], index: 2, kind: output, shape index: {}]
  %s3 = sld [smem:[#allocation0]]
  $region26: #{tpu_custom_call.1} parent=0
    _
  %s5 = ssub.s32 1, %s3
  %s6 = scalar_select 0, %s5, %s3
  $region1: #{tpu_custom_call.1} parent=0
    #allocation2 [shape = 'u8[2048]{0}', space=vmem, size = 0x800, scoped, tag = 'input window, operand 0, single buffered']
    #allocation3 [shape = 's32[1]{0}', space=sflag, size = 0x4, scoped, tag = 'scoped memory for tpu_custom_call.1']
    #allocation4 [shape = 's32[1]{0}', space=sflag, size = 0x4, scoped, tag = 'scoped memory for tpu_custom_call.1']
    #allocation5 [shape = 'u8[4096]{0}', space=vmem, size = 0x1000, scoped, tag = 'input window, operand 1, single buffered']
    #allocation6 [shape = 's32[1]{0}', space=sflag, size = 0x4, scoped, tag = 'scoped memory for tpu_custom_call.1']
    #allocation7 [shape = 'u8[16384]{0}', space=vmem, size = 0x4000, scoped, tag = 'output window, operand 0, single buffered']
    %7 = vsyncpa [#allocation3], 0
    %8 = vsyncpa [#allocation6], 0
    %9 = vsyncpa [#allocation4], 0
    // Predicated region
    $region2: #{tpu_custom_call.1} parent=1 // pred_check
      _
    $region3: #{tpu_custom_call.1} parent=1 // pred_check_branch
      %11 = sbr.rel (0) target = $region5
    $region4: #{tpu_custom_call.1} parent=1 // pred_region
      %s13 = ssub.s32 64, 64
      %14 = vsyncadd [#allocation3], %s13
      %s16 = sshll.u32 [#allocation2], 4
      %s17 = int_to_ptr.vmem [resolvable:$true] %s16
      %19 = dma.hbm_to_vmem [thread:$0]  %s0, 64, %s17, [#allocation3]
    $region5: #{tpu_custom_call.1} parent=1 // pred_fallthru
      _
    // Predicated region
    $region6: #{tpu_custom_call.1} parent=1 // pred_check
      _
    $region7: #{tpu_custom_call.1} parent=1 // pred_check_branch
      %21 = sbr.rel (0) target = $region9
    $region8: #{tpu_custom_call.1} parent=1 // pred_region
      %s23 = ssub.s32 128, 128
      %24 = vsyncadd [#allocation6], %s23
      %s26 = sshll.u32 [#allocation5], 4
      %s27 = int_to_ptr.vmem [resolvable:$true] %s26
      %29 = dma.hbm_to_vmem [thread:$0]  %s1, 128, %s27, [#allocation6]
    $region9: #{tpu_custom_call.1} parent=1 // pred_fallthru
      _
    // Predicated region
    $region10: #{tpu_custom_call.1} parent=1 // pred_check
      _
    $region11: #{tpu_custom_call.1} parent=1 // pred_check_branch
      %31 = sbr.rel (0) target = $region13
    $region12: #{tpu_custom_call.1} parent=1 // pred_region
      %32 = dma.done [#allocation3], 64
    $region13: #{tpu_custom_call.1} parent=1 // pred_fallthru
      _
    // Predicated region
    $region14: #{tpu_custom_call.1} parent=1 // pred_check
      _
    $region15: #{tpu_custom_call.1} parent=1 // pred_check_branch
      %34 = sbr.rel (0) target = $region17
    $region16: #{tpu_custom_call.1} parent=1 // pred_region
      %35 = dma.done [#allocation6], 128
    $region17: #{tpu_custom_call.1} parent=1 // pred_fallthru
      _
    %v36 = vlaneseq
    %v37 = vshrl.u32 %v36, 7
    %v38 = vadd.s32 %v37, 8
    %v39 = vadd.s32 %v37, 16
    %v40 = vadd.s32 %v37, 24
    %v41 = vadd.s32 %v37, 32
    %v42 = vadd.s32 %v37, 40
    %v43 = vadd.s32 %v37, 48
    %v44 = vadd.s32 %v37, 56
    %v45 = vadd.s32 %v37, 64
    %v46 = vadd.s32 %v37, 72
    %v47 = vadd.s32 %v37, 80
    %v48 = vadd.s32 %v37, 88
    %v49 = vadd.s32 %v37, 96
    %v50 = vadd.s32 %v37, 104
    %v51 = vadd.s32 %v37, 112
    %v52 = vadd.s32 %v37, 120
    %v53 = vld [vmem:[#allocation2] sm:$0x3]
    %v54 = vlaneseq
    %v55 = vshrl.u32 %v54, 7
    %v56 = vsub.s32 0, %v55
    %v57 = vrot.slane %v53, %v56
    %v58 = vlaneseq
    %v59 = vshrl.u32 %v58, 7
    %v60 = vsub.s32 1, %v59
    %v61 = vrot.slane %v53, %v60
    %vm62 = vcmp.eq.s32.totalorder %v57, %v37
    %vm63 = vcmp.eq.s32.totalorder %v61, %v37
    %vm64 = vcmp.eq.s32.totalorder %v57, %v38
    %vm65 = vcmp.eq.s32.totalorder %v61, %v38
    %vm66 = vcmp.eq.s32.totalorder %v57, %v39
    %vm67 = vcmp.eq.s32.totalorder %v61, %v39
    %vm68 = vcmp.eq.s32.totalorder %v57, %v40
    %vm69 = vcmp.eq.s32.totalorder %v61, %v40
    %vm70 = vcmp.eq.s32.totalorder %v57, %v41
    %vm71 = vcmp.eq.s32.totalorder %v61, %v41
    %vm72 = vcmp.eq.s32.totalorder %v57, %v42
    %vm73 = vcmp.eq.s32.totalorder %v61, %v42
    %vm74 = vcmp.eq.s32.totalorder %v57, %v43
    %vm75 = vcmp.eq.s32.totalorder %v61, %v43
    %vm76 = vcmp.eq.s32.totalorder %v57, %v44
    %vm77 = vcmp.eq.s32.totalorder %v61, %v44
    %vm78 = vcmp.eq.s32.totalorder %v57, %v45
    %vm79 = vcmp.eq.s32.totalorder %v61, %v45
    %vm80 = vcmp.eq.s32.totalorder %v57, %v46
    %vm81 = vcmp.eq.s32.totalorder %v61, %v46
    %vm82 = vcmp.eq.s32.totalorder %v57, %v47
    %vm83 = vcmp.eq.s32.totalorder %v61, %v47
    %vm84 = vcmp.eq.s32.totalorder %v57, %v48
    %vm85 = vcmp.eq.s32.totalorder %v61, %v48
    %vm86 = vcmp.eq.s32.totalorder %v57, %v49
    %vm87 = vcmp.eq.s32.totalorder %v61, %v49
    %vm88 = vcmp.eq.s32.totalorder %v57, %v50
    %vm89 = vcmp.eq.s32.totalorder %v61, %v50
    %vm90 = vcmp.eq.s32.totalorder %v57, %v51
    %vm91 = vcmp.eq.s32.totalorder %v61, %v51
    %vm92 = vcmp.eq.s32.totalorder %v57, %v52
    %vm93 = vcmp.eq.s32.totalorder %v61, %v52
    %v94 = vsel %vm62, 1, 0
    %v95 = vsel %vm63, 1, 0
    %v96 = vsel %vm64, 1, 0
    %v97 = vsel %vm65, 1, 0
    %v98 = vsel %vm66, 1, 0
    %v99 = vsel %vm67, 1, 0
    %v100 = vsel %vm68, 1, 0
    %v101 = vsel %vm69, 1, 0
    %v102 = vsel %vm70, 1, 0
    %v103 = vsel %vm71, 1, 0
    %v104 = vsel %vm72, 1, 0
    %v105 = vsel %vm73, 1, 0
    %v106 = vsel %vm74, 1, 0
    %v107 = vsel %vm75, 1, 0
    %v108 = vsel %vm76, 1, 0
    %v109 = vsel %vm77, 1, 0
    %v110 = vsel %vm78, 1, 0
    %v111 = vsel %vm79, 1, 0
    %v112 = vsel %vm80, 1, 0
    %v113 = vsel %vm81, 1, 0
    %v114 = vsel %vm82, 1, 0
    %v115 = vsel %vm83, 1, 0
    %v116 = vsel %vm84, 1, 0
    %v117 = vsel %vm85, 1, 0
    %v118 = vsel %vm86, 1, 0
    %v119 = vsel %vm87, 1, 0
    %v120 = vsel %vm88, 1, 0
    %v121 = vsel %vm89, 1, 0
    %v122 = vsel %vm90, 1, 0
    %v123 = vsel %vm91, 1, 0
    %v124 = vsel %vm92, 1, 0
    %v125 = vsel %vm93, 1, 0
    %v126 = vcvt.s32.f32 %v94
    %v127 = vcvt.s32.f32 %v95
    %v128 = vcvt.s32.f32 %v96
    %v129 = vcvt.s32.f32 %v97
    %v130 = vcvt.s32.f32 %v98
    %v131 = vcvt.s32.f32 %v99
    %v132 = vcvt.s32.f32 %v100
    %v133 = vcvt.s32.f32 %v101
    %v134 = vcvt.s32.f32 %v102
    %v135 = vcvt.s32.f32 %v103
    %v136 = vcvt.s32.f32 %v104
    %v137 = vcvt.s32.f32 %v105
    %v138 = vcvt.s32.f32 %v106
    %v139 = vcvt.s32.f32 %v107
    %v140 = vcvt.s32.f32 %v108
    %v141 = vcvt.s32.f32 %v109
    %v142 = vcvt.s32.f32 %v110
    %v143 = vcvt.s32.f32 %v111
    %v144 = vcvt.s32.f32 %v112
    %v145 = vcvt.s32.f32 %v113
    %v146 = vcvt.s32.f32 %v114
    %v147 = vcvt.s32.f32 %v115
    %v148 = vcvt.s32.f32 %v116
    %v149 = vcvt.s32.f32 %v117
    %v150 = vcvt.s32.f32 %v118
    %v151 = vcvt.s32.f32 %v119
    %v152 = vcvt.s32.f32 %v120
    %v153 = vcvt.s32.f32 %v121
    %v154 = vcvt.s32.f32 %v122
    %v155 = vcvt.s32.f32 %v123
    %v156 = vcvt.s32.f32 %v124
    %v157 = vcvt.s32.f32 %v125
    %v158 = vld [vmem:[#allocation5] sm:$0xff]
    %159 = vmatprep.subr.mxu0 %v127
    %160 = vmatpush1.msra.mxu0 %v126
    %161 = vmatprep.subr.mxu0 %v129
    %162 = vmatpush1.msra.mxu0 %v128
    %163 = vmatprep.subr.mxu0 %v131
    %164 = vmatpush1.msra.mxu0 %v130
    %165 = vmatprep.subr.mxu0 %v133
    %166 = vmatpush1.msra.mxu0 %v132
    %167 = vmatprep.subr.mxu0 %v135
    %168 = vmatpush1.msra.mxu0 %v134
    %169 = vmatprep.subr.mxu0 %v137
    %170 = vmatpush1.msra.mxu0 %v136
    %171 = vmatprep.subr.mxu0 %v139
    %172 = vmatpush1.msra.mxu0 %v138
    %173 = vmatprep.subr.mxu0 %v141
    %174 = vmatpush1.msra.mxu0 %v140
    %175 = vmatprep.subr.mxu0 %v143
    %176 = vmatpush1.msra.mxu0 %v142
    %177 = vmatprep.subr.mxu0 %v145
    %178 = vmatpush1.msra.mxu0 %v144
    %179 = vmatprep.subr.mxu0 %v147
    %180 = vmatpush1.msra.mxu0 %v146
    %181 = vmatprep.subr.mxu0 %v149
    %182 = vmatpush1.msra.mxu0 %v148
    %183 = vmatprep.subr.mxu0 %v151
    %184 = vmatpush1.msra.mxu0 %v150
    %185 = vmatprep.subr.mxu0 %v153
    %186 = vmatpush1.msra.mxu0 %v152
    %187 = vmatprep.subr.mxu0 %v155
    %188 = vmatpush1.msra.mxu0 %v154
    %189 = vmatprep.subr.mxu0 %v157
    %190 = vmatpush1.msra.mxu0 %v156
    %191 = vmatprep.subr.mxu0 0.0
    %192 = vmatpush1.msra.mxu0 0.0
    %193 = vmatprep.subr.mxu0 0.0
    %194 = vmatpush1.msra.mxu0 0.0
    %195 = vmatprep.subr.mxu0 0.0
    %196 = vmatpush1.msra.mxu0 0.0
    %197 = vmatprep.subr.mxu0 0.0
    %198 = vmatpush1.msra.mxu0 0.0
    %199 = vmatprep.subr.mxu0 0.0
    %200 = vmatpush1.msra.mxu0 0.0
    %201 = vmatprep.subr.mxu0 0.0
    %202 = vmatpush1.msra.mxu0 0.0
    %203 = vmatprep.subr.mxu0 0.0
    %204 = vmatpush1.msra.mxu0 0.0
    %205 = vmatprep.subr.mxu0 0.0
    %206 = vmatpush1.msra.mxu0 0.0
    %207 = vmatprep.subr.mxu0 0.0
    %208 = vmatpush1.msra.mxu0 0.0
    %209 = vmatprep.subr.mxu0 0.0
    %210 = vmatpush1.msra.mxu0 0.0
    %211 = vmatprep.subr.mxu0 0.0
    %212 = vmatpush1.msra.mxu0 0.0
    %213 = vmatprep.subr.mxu0 0.0
    %214 = vmatpush1.msra.mxu0 0.0
    %215 = vmatprep.subr.mxu0 0.0
    %216 = vmatpush1.msra.mxu0 0.0
    %217 = vmatprep.subr.mxu0 0.0
    %218 = vmatpush1.msra.mxu0 0.0
    %219 = vmatprep.subr.mxu0 0.0
    %220 = vmatpush1.msra.mxu0 0.0
    %221 = vmatprep.subr.mxu0 0.0
    %222 = vmatpush1.msra.mxu0 0.0
    %223 = vmatprep.mubr.f32.mxu0 0.0
    %224 = vmatmul.mubr.f32.gmra.mrb[0].mxu0 %v158
    %v225 = vpop.f32.mrb[0].mxu0
    %v226 = vadd.f32 0.0, %v225
    %v227 = vpop.f32.mrb[0].mxu0
    %v228 = vadd.f32 0.0, %v227
    %229 = vdwg.mxu0
    %230 = vst [vmem:[#allocation7] sm:$0xff] %v226
    %231 = vst [vmem:[#allocation7 + $0x8] sm:$0xff] %v228
    %v232 = vld [vmem:[#allocation2 + $0x2] sm:$0x3]
    %v233 = vlaneseq
    %v234 = vshrl.u32 %v233, 7
    %v235 = vsub.s32 0, %v234
    %v236 = vrot.slane %v232, %v235
    %v237 = vlaneseq
    %v238 = vshrl.u32 %v237, 7
    %v239 = vsub.s32 1, %v238
    %v240 = vrot.slane %v232, %v239
    %vm241 = vcmp.eq.s32.totalorder %v236, %v37
    %vm242 = vcmp.eq.s32.totalorder %v240, %v37
    %vm243 = vcmp.eq.s32.totalorder %v236, %v38
    %vm244 = vcmp.eq.s32.totalorder %v240, %v38
    %vm245 = vcmp.eq.s32.totalorder %v236, %v39
    %vm246 = vcmp.eq.s32.totalorder %v240, %v39
    %vm247 = vcmp.eq.s32.totalorder %v236, %v40
    %vm248 = vcmp.eq.s32.totalorder %v240, %v40
    %vm249 = vcmp.eq.s32.totalorder %v236, %v41
    %vm250 = vcmp.eq.s32.totalorder %v240, %v41
    %vm251 = vcmp.eq.s32.totalorder %v236, %v42
    %vm252 = vcmp.eq.s32.totalorder %v240, %v42
    %vm253 = vcmp.eq.s32.totalorder %v236, %v43
    %vm254 = vcmp.eq.s32.totalorder %v240, %v43
    %vm255 = vcmp.eq.s32.totalorder %v236, %v44
    %vm256 = vcmp.eq.s32.totalorder %v240, %v44
    %vm257 = vcmp.eq.s32.totalorder %v236, %v45
    %vm258 = vcmp.eq.s32.totalorder %v240, %v45
    %vm259 = vcmp.eq.s32.totalorder %v236, %v46
    %vm260 = vcmp.eq.s32.totalorder %v240, %v46
    %vm261 = vcmp.eq.s32.totalorder %v236, %v47
    %vm262 = vcmp.eq.s32.totalorder %v240, %v47
    %vm263 = vcmp.eq.s32.totalorder %v236, %v48
    %vm264 = vcmp.eq.s32.totalorder %v240, %v48
    %vm265 = vcmp.eq.s32.totalorder %v236, %v49
    %vm266 = vcmp.eq.s32.totalorder %v240, %v49
    %vm267 = vcmp.eq.s32.totalorder %v236, %v50
    %vm268 = vcmp.eq.s32.totalorder %v240, %v50
    %vm269 = vcmp.eq.s32.totalorder %v236, %v51
    %vm270 = vcmp.eq.s32.totalorder %v240, %v51
    %vm271 = vcmp.eq.s32.totalorder %v236, %v52
    %vm272 = vcmp.eq.s32.totalorder %v240, %v52
    %v273 = vsel %vm241, 1, 0
    %v274 = vsel %vm242, 1, 0
    %v275 = vsel %vm243, 1, 0
    %v276 = vsel %vm244, 1, 0
    %v277 = vsel %vm245, 1, 0
    %v278 = vsel %vm246, 1, 0
    %v279 = vsel %vm247, 1, 0
    %v280 = vsel %vm248, 1, 0
    %v281 = vsel %vm249, 1, 0
    %v282 = vsel %vm250, 1, 0
    %v283 = vsel %vm251, 1, 0
    %v284 = vsel %vm252, 1, 0
    %v285 = vsel %vm253, 1, 0
    %v286 = vsel %vm254, 1, 0
    %v287 = vsel %vm255, 1, 0
    %v288 = vsel %vm256, 1, 0
    %v289 = vsel %vm257, 1, 0
    %v290 = vsel %vm258, 1, 0
    %v291 = vsel %vm259, 1, 0
    %v292 = vsel %vm260, 1, 0
    %v293 = vsel %vm261, 1, 0
    %v294 = vsel %vm262, 1, 0
    %v295 = vsel %vm263, 1, 0
    %v296 = vsel %vm264, 1, 0
    %v297 = vsel %vm265, 1, 0
    %v298 = vsel %vm266, 1, 0
    %v299 = vsel %vm267, 1, 0
    %v300 = vsel %vm268, 1, 0
    %v301 = vsel %vm269, 1, 0
    %v302 = vsel %vm270, 1, 0
    %v303 = vsel %vm271, 1, 0
    %v304 = vsel %vm272, 1, 0
    %v305 = vcvt.s32.f32 %v273
    %v306 = vcvt.s32.f32 %v274
    %v307 = vcvt.s32.f32 %v275
    %v308 = vcvt.s32.f32 %v276
    %v309 = vcvt.s32.f32 %v277
    %v310 = vcvt.s32.f32 %v278
    %v311 = vcvt.s32.f32 %v279
    %v312 = vcvt.s32.f32 %v280
    %v313 = vcvt.s32.f32 %v281
    %v314 = vcvt.s32.f32 %v282
    %v315 = vcvt.s32.f32 %v283
    %v316 = vcvt.s32.f32 %v284
    %v317 = vcvt.s32.f32 %v285
    %v318 = vcvt.s32.f32 %v286
    %v319 = vcvt.s32.f32 %v287
    %v320 = vcvt.s32.f32 %v288
    %v321 = vcvt.s32.f32 %v289
    %v322 = vcvt.s32.f32 %v290
    %v323 = vcvt.s32.f32 %v291
    %v324 = vcvt.s32.f32 %v292
    %v325 = vcvt.s32.f32 %v293
    %v326 = vcvt.s32.f32 %v294
    %v327 = vcvt.s32.f32 %v295
    %v328 = vcvt.s32.f32 %v296
    %v329 = vcvt.s32.f32 %v297
    %v330 = vcvt.s32.f32 %v298
    %v331 = vcvt.s32.f32 %v299
    %v332 = vcvt.s32.f32 %v300
    %v333 = vcvt.s32.f32 %v301
    %v334 = vcvt.s32.f32 %v302
    %v335 = vcvt.s32.f32 %v303
    %v336 = vcvt.s32.f32 %v304
    %v337 = vld [vmem:[#allocation5] sm:$0xff]
    %338 = vmatprep.subr.mxu0 %v306
    %339 = vmatpush1.msra.mxu0 %v305
    %340 = vmatprep.subr.mxu0 %v308
    %341 = vmatpush1.msra.mxu0 %v307
    %342 = vmatprep.subr.mxu0 %v310
    %343 = vmatpush1.msra.mxu0 %v309
    %344 = vmatprep.subr.mxu0 %v312
    %345 = vmatpush1.msra.mxu0 %v311
    %346 = vmatprep.subr.mxu0 %v314
    %347 = vmatpush1.msra.mxu0 %v313
    %348 = vmatprep.subr.mxu0 %v316
    %349 = vmatpush1.msra.mxu0 %v315
    %350 = vmatprep.subr.mxu0 %v318
    %351 = vmatpush1.msra.mxu0 %v317
    %352 = vmatprep.subr.mxu0 %v320
    %353 = vmatpush1.msra.mxu0 %v319
    %354 = vmatprep.subr.mxu0 %v322
    %355 = vmatpush1.msra.mxu0 %v321
    %356 = vmatprep.subr.mxu0 %v324
    %357 = vmatpush1.msra.mxu0 %v323
    %358 = vmatprep.subr.mxu0 %v326
    %359 = vmatpush1.msra.mxu0 %v325
    %360 = vmatprep.subr.mxu0 %v328
    %361 = vmatpush1.msra.mxu0 %v327
    %362 = vmatprep.subr.mxu0 %v330
    %363 = vmatpush1.msra.mxu0 %v329
    %364 = vmatprep.subr.mxu0 %v332
    %365 = vmatpush1.msra.mxu0 %v331
    %366 = vmatprep.subr.mxu0 %v334
    %367 = vmatpush1.msra.mxu0 %v333
    %368 = vmatprep.subr.mxu0 %v336
    %369 = vmatpush1.msra.mxu0 %v335
    %370 = vmatprep.subr.mxu0 0.0
    %371 = vmatpush1.msra.mxu0 0.0
    %372 = vmatprep.subr.mxu0 0.0
    %373 = vmatpush1.msra.mxu0 0.0
    %374 = vmatprep.subr.mxu0 0.0
    %375 = vmatpush1.msra.mxu0 0.0
    %376 = vmatprep.subr.mxu0 0.0
    %377 = vmatpush1.msra.mxu0 0.0
    %378 = vmatprep.subr.mxu0 0.0
    %379 = vmatpush1.msra.mxu0 0.0
    %380 = vmatprep.subr.mxu0 0.0
    %381 = vmatpush1.msra.mxu0 0.0
    %382 = vmatprep.subr.mxu0 0.0
    %383 = vmatpush1.msra.mxu0 0.0
    %384 = vmatprep.subr.mxu0 0.0
    %385 = vmatpush1.msra.mxu0 0.0
    %386 = vmatprep.subr.mxu0 0.0
    %387 = vmatpush1.msra.mxu0 0.0
    %388 = vmatprep.subr.mxu0 0.0
    %389 = vmatpush1.msra.mxu0 0.0
    %390 = vmatprep.subr.mxu0 0.0
    %391 = vmatpush1.msra.mxu0 0.0
    %392 = vmatprep.subr.mxu0 0.0
    %393 = vmatpush1.msra.mxu0 0.0
    %394 = vmatprep.subr.mxu0 0.0
    %395 = vmatpush1.msra.mxu0 0.0
    %396 = vmatprep.subr.mxu0 0.0
    %397 = vmatpush1.msra.mxu0 0.0
    %398 = vmatprep.subr.mxu0 0.0
    %399 = vmatpush1.msra.mxu0 0.0
    %400 = vmatprep.subr.mxu0 0.0
    %401 = vmatpush1.msra.mxu0 0.0
    %402 = vmatprep.mubr.f32.mxu0 0.0
    %403 = vmatmul.mubr.f32.gmra.mrb[0].mxu0 %v337
    %v404 = vpop.f32.mrb[0].mxu0
    %v405 = vadd.f32 0.0, %v404
    %v406 = vpop.f32.mrb[0].mxu0
    %v407 = vadd.f32 0.0, %v406
    %408 = vdwg.mxu0
    %409 = vst [vmem:[#allocation7 + $0x10] sm:$0xff] %v405
    %410 = vst [vmem:[#allocation7 + $0x18] sm:$0xff] %v407
    // Predicated region
    $region18: #{tpu_custom_call.1} parent=1 // pred_check
      _
    $region19: #{tpu_custom_call.1} parent=1 // pred_check_branch
      %412 = sbr.rel (0) target = $region21
    $region20: #{tpu_custom_call.1} parent=1 // pred_region
      %s414 = ssub.s32 512, 512
      %415 = vsyncadd [#allocation4], %s414
      %s417 = sshll.u32 [#allocation7], 4
      %s418 = int_to_ptr.vmem [resolvable:$true] %s417
      %420 = dma.vmem_to_hbm [thread:$0]  %s418, 512, %s2, [#allocation4]
    $region21: #{tpu_custom_call.1} parent=1 // pred_fallthru
      _
    // Predicated region
    $region22: #{tpu_custom_call.1} parent=1 // pred_check
      _
    $region23: #{tpu_custom_call.1} parent=1 // pred_check_branch
      %422 = sbr.rel (0) target = $region25
    $region24: #{tpu_custom_call.1} parent=1 // pred_region
      %423 = dma.done [#allocation4], 512
    $region25: #{tpu_custom_call.1} parent=1 // pred_fallthru
      _
    %424 = vsyncpa [#allocation3], 1
    %425 = vsyncpa [#allocation6], 1
    %426 = vsyncpa [#allocation4], 1

</llo_original>
